<compile_context>
chip_gen: v7x
topology: tpu7x:2x2x1
jax: 0.10.0
libtpu: 0.0.40
codegen_flags: <defaults>
</compile_context>

<pallas_src>
import functools

import jax
import jax.numpy as jnp
from jax import lax
from jax.experimental import pallas as pl
from jax.experimental.pallas import tpu as pltpu

_LANE = 128


def _attention_kernel(f1_ref, f2_ref, f3_ref, w1_ref, b1_ref, w2_ref,
                      b2_row_ref, b2_col_ref, att_ref, fused_ref, *,
                      scale, dim):
    # Feature tiles stay in their native dtype; matmuls accumulate in f32 via
    # preferred_element_type (no explicit up-cast copies held in VMEM).
    f1 = f1_ref[...]                                    # (TB, D)
    f2 = f2_ref[...]
    f3 = f3_ref[...]

    # h = ReLU([f1 | f2 | f3] @ W1 + b1), W1 split into three row-blocks via
    # static ref slices -- avoids materializing the (TB, 3*D) concat copy.
    h = jnp.dot(f1, w1_ref[0:dim, :], preferred_element_type=jnp.float32)
    h = h + jnp.dot(f2, w1_ref[dim:2 * dim, :],
                    preferred_element_type=jnp.float32)
    h = h + jnp.dot(f3, w1_ref[2 * dim:3 * dim, :],
                    preferred_element_type=jnp.float32)
    # TODO(synk): nn.Dropout omitted (eval/inference semantics -> identity).
    h = jnp.maximum(h + b1_ref[...], 0.0)               # (TB, H) f32

    # fc_att (+ scale) and softmax over the 3 modalities.  w2 is (3, H), so
    # both orientations below are the natively supported A @ B^T MXU pattern.
    dn = (((1,), (1,)), ((), ()))                       # contract last dims
    logits = (lax.dot_general(h, w2_ref[...], dn,
                              preferred_element_type=jnp.float32)
              + b2_row_ref[...]) * scale                # (TB, 3)
    m = jnp.max(logits, axis=1, keepdims=True)
    e = jnp.exp(logits - m)
    att = e / jnp.sum(e, axis=1, keepdims=True)         # (TB, 3), exact divide

    # Lane-dense (3, TB) copy of the same softmax for the attention output
    # (batch on the lane axis -> unmasked stores, tiny VMEM footprint).
    logits_t = (lax.dot_general(w2_ref[...], h, dn,
                                preferred_element_type=jnp.float32)
                + b2_col_ref[...]) * scale              # (3, TB)
    m_t = jnp.max(logits_t, axis=0, keepdims=True)
    e_t = jnp.exp(logits_t - m_t)
    att_ref[...] = (e_t / jnp.sum(e_t, axis=0, keepdims=True)
                    ).astype(att_ref.dtype)

    # fused = stack([f1,f2,f3], dim=2) @ att[..., None] == sum_k att_k * f_k.
    # bf16 elementwise path when features are bf16 (v6e/v7x have bf16 VALU);
    # f32 otherwise (and always correct on v5e).
    cd = jnp.bfloat16 if f1.dtype == jnp.bfloat16 else jnp.float32
    fused = (f1.astype(cd) * att[:, 0:1].astype(cd)
             + f2.astype(cd) * att[:, 1:2].astype(cd)
             + f3.astype(cd) * att[:, 2:3].astype(cd))
    fused_ref[...] = fused.astype(fused_ref.dtype)


def _round_down(x, m):
    return (x // m) * m


def _round_up(x, m):
    return ((x + m - 1) // m) * m


def _vmem_budget_bytes():
    """Per-chip VMEM budget (~half of physical) and scoped limit."""
    try:
        cap = int(pltpu.get_tpu_info().vmem_capacity_bytes)
    except Exception:
        cap = 64 * 1024 * 1024            # conservative fallback, valid everywhere
    budget = max(16 * 1024 * 1024, min(cap // 2, 64 * 1024 * 1024))
    limit = min(int(cap * 0.9), budget + 32 * 1024 * 1024)
    return budget, limit


def _per_row_bytes(dim, hidden, feat_itemsize):
    """Conservative VMEM bytes per batch row: double-buffered tiles + temps."""
    io = 2 * (3 * dim * feat_itemsize     # f1/f2/f3 input tiles
              + dim * feat_itemsize       # fused output tile
              + 8 * 4)                    # lane-dense (3, tb) att tile (sublane pad)
    inter = (2 * hidden * 4               # h + one matmul temporary (f32)
             + 3 * _LANE * 4              # lane-padded (tb, 3) softmax temps
             + 2 * dim * 4)               # f32 temporaries in the weighted sum
    return io + inter


def _pick_batch_tile(B, dim, hidden, feat_itemsize, weight_bytes, block_b,
                     budget, min_steps=4):
    """Largest batch tile that fits the VMEM budget, keeping a multi-step grid.

    Returned tile is either B (single tile) or a multiple of 128 (so the
    lane-dense (3, tb) attention block satisfies the (8, 128) constraint).
    """
    if B <= _LANE:
        return B                          # single tiny tile; trivially fits
    avail = budget - 2 * weight_bytes     # weights are double-buffered once
    if avail < budget // 4:
        avail = budget // 4               # degenerate huge weights: best effort
    tb_budget = max(_LANE, _round_down(
        avail // _per_row_bytes(dim, hidden, feat_itemsize), _LANE))
    tb_user = max(_LANE, _round_down(int(block_b), _LANE))
    # Keep >= min_steps grid steps for large B (feeds both v7x TensorCores and
    # the software pipeline) as long as tiles stay >= 1024 rows.
    if B >= min_steps * 1024:
        tb_steps = _round_up(pl.cdiv(B, min_steps), _LANE)
    else:
        tb_steps = B
    tb = min(tb_budget, tb_user, tb_steps)
    if tb >= B:
        return B
    return tb


def attention_forward(feas1, feas2, feas3, w1, b1, w2, b2, *, block_b=4096):
    """Returns (attention (B, 3, 1), fused_feat (B, dim)) matching PyTorch."""
    B, dim = feas1.shape
    hidden = w1.shape[1]
    assert w1.shape == (3 * dim, hidden)  # pre-transposed (in, out)
    assert w2.shape == (3, hidden)        # native PyTorch fc_att layout
    scale = float(dim) ** (-0.5)

    feat_itemsize = jnp.dtype(feas1.dtype).itemsize
    weight_bytes = sum(int(a.size) * jnp.dtype(a.dtype).itemsize
                       for a in (w1, b1, w2, b2))
    budget, vmem_limit = _vmem_budget_bytes()
    tb = _pick_batch_tile(B, dim, hidden, feat_itemsize, weight_bytes,
                          block_b, budget)
    grid = (pl.cdiv(B, tb),)

    feat_spec = pl.BlockSpec((tb, dim), lambda i: (i, 0))
    # Weights/biases: constant index_map -> fetched once, kept resident across
    # the (parallel) batch grid; their VMEM cost is budgeted above.
    w1_spec = pl.BlockSpec((3 * dim, hidden), lambda i: (0, 0))
    b1_spec = pl.BlockSpec((1, hidden), lambda i: (0, 0))
    w2_spec = pl.BlockSpec((3, hidden), lambda i: (0, 0))
    b2r_spec = pl.BlockSpec((1, 3), lambda i: (0, 0))
    b2c_spec = pl.BlockSpec((3, 1), lambda i: (0, 0))

    kernel = functools.partial(_attention_kernel, scale=scale, dim=dim)

    att_t, fused = pl.pallas_call(
        kernel,
        out_shape=(
            jax.ShapeDtypeStruct((3, B), jnp.float32),   # lane-dense attention
            jax.ShapeDtypeStruct((B, dim), feas1.dtype),
        ),
        grid_spec=pltpu.PrefetchScalarGridSpec(
            num_scalar_prefetch=0,
            grid=grid,
            in_specs=[feat_spec, feat_spec, feat_spec,
                      w1_spec, b1_spec, w2_spec, b2r_spec, b2c_spec],
            out_specs=[
                pl.BlockSpec((3, tb), lambda i: (0, i)),
                pl.BlockSpec((tb, dim), lambda i: (i, 0)),
            ],
        ),
        compiler_params=pltpu.CompilerParams(
            dimension_semantics=("parallel",),
            vmem_limit_bytes=vmem_limit,
        ),
    )(feas1, feas2, feas3,
      w1, b1.reshape(1, hidden), w2, b2.reshape(1, 3), b2.reshape(3, 1))

    # Match PyTorch output shapes: attention (B, 3, 1), fused (B, dim).
    return jnp.transpose(att_t).reshape(B, 3, 1), fused


def _reference(feas1, feas2, feas3, w1, b1, w2, b2):
    dim = feas1.shape[1]
    scale = dim ** (-0.5)
    x = jnp.concatenate([feas1, feas2, feas3], axis=1)
    h = jax.nn.relu(x @ w1 + b1)
    logits = (h @ w2.T + b2) * scale
    att = jax.nn.softmax(logits, axis=1)[..., None]          # (B, 3, 1)
    mh2 = jnp.stack([feas1, feas2, feas3], axis=2)           # (B, dim, 3)
    fused = jnp.squeeze(mh2 @ att, axis=-1)                  # (B, dim)
    return att, fused


if __name__ == "__main__":
    B, dim, hidden = 16, 128, 64
    key = jax.random.PRNGKey(0)
    k1, k2, k3, kw1, kb1, kw2, kb2 = jax.random.split(key, 7)

    feas1 = jax.random.normal(k1, (B, dim), dtype=jnp.float32)
    feas2 = jax.random.normal(k2, (B, dim), dtype=jnp.float32)
    feas3 = jax.random.normal(k3, (B, dim), dtype=jnp.float32)

    # Deterministic synthetic parameters.  PyTorch shapes: W1 (hidden, 3*dim)
    # (stored pre-transposed (3*dim, hidden) here), W2 (3, hidden) (native).
    w1 = jax.random.normal(kw1, (3 * dim, hidden), dtype=jnp.float32) * 0.05
    b1 = jax.random.normal(kb1, (hidden,), dtype=jnp.float32) * 0.05
    w2 = jax.random.normal(kw2, (3, hidden), dtype=jnp.float32) * 0.05
    b2 = jax.random.normal(kb2, (3,), dtype=jnp.float32) * 0.05

    att, fused = attention_forward(feas1, feas2, feas3, w1, b1, w2, b2)
    jax.block_until_ready((att, fused))

    att_ref, fused_ref = _reference(feas1, feas2, feas3, w1, b1, w2, b2)
    assert att.shape == (B, 3, 1) and fused.shape == (B, dim)
    assert jnp.allclose(att, att_ref, atol=1e-4, rtol=1e-4)
    assert jnp.allclose(fused, fused_ref, atol=1e-4, rtol=1e-4)

    print("KERNEL_OK")
</pallas_src>

<mosaic_0001>
module attributes {stable_mosaic.version = 11 : i64} {
  func.func @_attention_kernel(%arg0: i32, %arg1: memref<16x128xf32, #tpu.memory_space<vmem>>, %arg2: memref<16x128xf32, #tpu.memory_space<vmem>>, %arg3: memref<16x128xf32, #tpu.memory_space<vmem>>, %arg4: memref<384x64xf32, #tpu.memory_space<vmem>>, %arg5: memref<1x64xf32, #tpu.memory_space<vmem>>, %arg6: memref<3x64xf32, #tpu.memory_space<vmem>>, %arg7: memref<1x3xf32, #tpu.memory_space<vmem>>, %arg8: memref<3x1xf32, #tpu.memory_space<vmem>>, %arg9: memref<3x16xf32, #tpu.memory_space<vmem>>, %arg10: memref<16x128xf32, #tpu.memory_space<vmem>>) attributes {dimension_semantics = [#tpu.dimension_semantics<parallel>], iteration_bounds = array<i64: 1>, scalar_prefetch = 0 : i64, scratch_operands = 0 : i64, tpu.core_type = #tpu.core_type<tc>, window_params = [{transform_indices = @transform_0, window_bounds = array<i64: 16, 128>}, {transform_indices = @transform_1, window_bounds = array<i64: 16, 128>}, {transform_indices = @transform_2, window_bounds = array<i64: 16, 128>}, {pipeline_mode = #tpu.pipeline_mode<synchronous>, transform_indices = @transform_3, window_bounds = array<i64: 384, 64>}, {pipeline_mode = #tpu.pipeline_mode<synchronous>, transform_indices = @transform_4, window_bounds = array<i64: 1, 64>}, {pipeline_mode = #tpu.pipeline_mode<synchronous>, transform_indices = @transform_5, window_bounds = array<i64: 3, 64>}, {pipeline_mode = #tpu.pipeline_mode<synchronous>, transform_indices = @transform_6, window_bounds = array<i64: 1, 3>}, {pipeline_mode = #tpu.pipeline_mode<synchronous>, transform_indices = @transform_7, window_bounds = array<i64: 3, 1>}, {transform_indices = @transform_8, window_bounds = array<i64: 3, 16>}, {transform_indices = @transform_9, window_bounds = array<i64: 16, 128>}]} {
    %c0 = arith.constant 0 : index
    %c0_0 = arith.constant 0 : index
    %0 = vector.load %arg1[%c0, %c0_0] : memref<16x128xf32, #tpu.memory_space<vmem>>, vector<16x128xf32>
    %c0_1 = arith.constant 0 : index
    %c0_2 = arith.constant 0 : index
    %1 = vector.load %arg2[%c0_1, %c0_2] : memref<16x128xf32, #tpu.memory_space<vmem>>, vector<16x128xf32>
    %c0_3 = arith.constant 0 : index
    %c0_4 = arith.constant 0 : index
    %2 = vector.load %arg3[%c0_3, %c0_4] : memref<16x128xf32, #tpu.memory_space<vmem>>, vector<16x128xf32>
    %c0_5 = arith.constant 0 : index
    %c0_6 = arith.constant 0 : index
    %3 = vector.load %arg4[%c0_5, %c0_6] : memref<384x64xf32, #tpu.memory_space<vmem>>, vector<128x64xf32>
    %cst = arith.constant dense<0.000000e+00> : vector<16x64xf32>
    %4 = tpu.matmul %0, %3, %cst {dimension_numbers = #tpu.dot_dimension_numbers<[1], [0], [0], [1], [0, 0, 1, 1], [], []>} : vector<16x128xf32>, vector<128x64xf32>, vector<16x64xf32> -> vector<16x64xf32>
    %c128 = arith.constant 128 : index
    %c0_7 = arith.constant 0 : index
    %5 = vector.load %arg4[%c128, %c0_7] : memref<384x64xf32, #tpu.memory_space<vmem>>, vector<128x64xf32>
    %cst_8 = arith.constant dense<0.000000e+00> : vector<16x64xf32>
    %6 = tpu.matmul %1, %5, %cst_8 {dimension_numbers = #tpu.dot_dimension_numbers<[1], [0], [0], [1], [0, 0, 1, 1], [], []>} : vector<16x128xf32>, vector<128x64xf32>, vector<16x64xf32> -> vector<16x64xf32>
    %7 = arith.addf %4, %6 : vector<16x64xf32>
    %c256 = arith.constant 256 : index
    %c0_9 = arith.constant 0 : index
    %8 = vector.load %arg4[%c256, %c0_9] : memref<384x64xf32, #tpu.memory_space<vmem>>, vector<128x64xf32>
    %cst_10 = arith.constant dense<0.000000e+00> : vector<16x64xf32>
    %9 = tpu.matmul %2, %8, %cst_10 {dimension_numbers = #tpu.dot_dimension_numbers<[1], [0], [0], [1], [0, 0, 1, 1], [], []>} : vector<16x128xf32>, vector<128x64xf32>, vector<16x64xf32> -> vector<16x64xf32>
    %10 = arith.addf %7, %9 : vector<16x64xf32>
    %c0_11 = arith.constant 0 : index
    %c0_12 = arith.constant 0 : index
    %11 = vector.load %arg5[%c0_11, %c0_12] : memref<1x64xf32, #tpu.memory_space<vmem>>, vector<1x64xf32>
    %12 = vector.broadcast %11 : vector<1x64xf32> to vector<16x64xf32>
    %13 = arith.addf %10, %12 : vector<16x64xf32>
    %cst_13 = arith.constant 0.000000e+00 : f32
    %14 = vector.broadcast %cst_13 : f32 to vector<16x64xf32>
    %15 = arith.maximumf %13, %14 : vector<16x64xf32>
    %c0_14 = arith.constant 0 : index
    %c0_15 = arith.constant 0 : index
    %16 = vector.load %arg6[%c0_14, %c0_15] : memref<3x64xf32, #tpu.memory_space<vmem>>, vector<3x64xf32>
    %cst_16 = arith.constant dense<0.000000e+00> : vector<16x3xf32>
    %17 = tpu.matmul %15, %16, %cst_16 {dimension_numbers = #tpu.dot_dimension_numbers<[1], [1], [0], [0], [0, 0, 1, 0], [], []>} : vector<16x64xf32>, vector<3x64xf32>, vector<16x3xf32> -> vector<16x3xf32>
    %c0_17 = arith.constant 0 : index
    %c0_18 = arith.constant 0 : index
    %18 = vector.load %arg7[%c0_17, %c0_18] : memref<1x3xf32, #tpu.memory_space<vmem>>, vector<1x3xf32>
    %19 = vector.broadcast %18 : vector<1x3xf32> to vector<16x3xf32>
    %20 = arith.addf %17, %19 : vector<16x3xf32>
    %cst_19 = arith.constant 0.0883883461 : f32
    %21 = vector.broadcast %cst_19 : f32 to vector<16x3xf32>
    %22 = arith.mulf %20, %21 : vector<16x3xf32>
    %cst_20 = arith.constant dense<0xFF800000> : vector<16xf32>
    %23 = vector.multi_reduction <maximumf>, %22, %cst_20 [1] : vector<16x3xf32> to vector<16xf32>
    %24 = vector.shape_cast %23 : vector<16xf32> to vector<16x1xf32>
    %25 = vector.broadcast %24 : vector<16x1xf32> to vector<16x3xf32>
    %26 = arith.subf %22, %25 : vector<16x3xf32>
    %27 = math.exp %26 : vector<16x3xf32>
    %cst_21 = arith.constant dense<0.000000e+00> : vector<16xf32>
    %28 = vector.multi_reduction <add>, %27, %cst_21 [1] : vector<16x3xf32> to vector<16xf32>
    %29 = vector.shape_cast %28 : vector<16xf32> to vector<16x1xf32>
    %30 = vector.broadcast %29 : vector<16x1xf32> to vector<16x3xf32>
    %31 = arith.divf %27, %30 : vector<16x3xf32>
    %c0_22 = arith.constant 0 : index
    %c0_23 = arith.constant 0 : index
    %32 = vector.load %arg6[%c0_22, %c0_23] : memref<3x64xf32, #tpu.memory_space<vmem>>, vector<3x64xf32>
    %cst_24 = arith.constant dense<0.000000e+00> : vector<3x16xf32>
    %33 = tpu.matmul %32, %15, %cst_24 {dimension_numbers = #tpu.dot_dimension_numbers<[1], [1], [0], [0], [0, 0, 1, 0], [], []>} : vector<3x64xf32>, vector<16x64xf32>, vector<3x16xf32> -> vector<3x16xf32>
    %c0_25 = arith.constant 0 : index
    %c0_26 = arith.constant 0 : index
    %34 = vector.load %arg8[%c0_25, %c0_26] : memref<3x1xf32, #tpu.memory_space<vmem>>, vector<3x1xf32>
    %35 = vector.broadcast %34 : vector<3x1xf32> to vector<3x16xf32>
    %36 = arith.addf %33, %35 : vector<3x16xf32>
    %cst_27 = arith.constant 0.0883883461 : f32
    %37 = vector.broadcast %cst_27 : f32 to vector<3x16xf32>
    %38 = arith.mulf %36, %37 : vector<3x16xf32>
    %cst_28 = arith.constant dense<0xFF800000> : vector<16xf32>
    %39 = vector.multi_reduction <maximumf>, %38, %cst_28 [0] : vector<3x16xf32> to vector<16xf32>
    %40 = vector.shape_cast %39 : vector<16xf32> to vector<1x16xf32>
    %41 = vector.broadcast %40 : vector<1x16xf32> to vector<3x16xf32>
    %42 = arith.subf %38, %41 : vector<3x16xf32>
    %43 = math.exp %42 : vector<3x16xf32>
    %cst_29 = arith.constant dense<0.000000e+00> : vector<16xf32>
    %44 = vector.multi_reduction <add>, %43, %cst_29 [0] : vector<3x16xf32> to vector<16xf32>
    %45 = vector.shape_cast %44 : vector<16xf32> to vector<1x16xf32>
    %46 = vector.broadcast %45 : vector<1x16xf32> to vector<3x16xf32>
    %47 = arith.divf %43, %46 : vector<3x16xf32>
    %c0_30 = arith.constant 0 : index
    %c0_31 = arith.constant 0 : index
    %48 = vector.load %arg9[%c0_30, %c0_31] : memref<3x16xf32, #tpu.memory_space<vmem>>, vector<3x16xf32>
    tpu.vector_store %arg9[%c0_30, %c0_31], %47 {strides = array<i32>} : memref<3x16xf32, #tpu.memory_space<vmem>>, vector<3x16xf32>,
    %49 = vector.extract_strided_slice %31 {offsets = [0, 0], sizes = [16, 1], strides = [1, 1]} : vector<16x3xf32> to vector<16x1xf32>
    %50 = vector.broadcast %49 : vector<16x1xf32> to vector<16x128xf32>
    %51 = arith.mulf %0, %50 : vector<16x128xf32>
    %52 = vector.extract_strided_slice %31 {offsets = [0, 1], sizes = [16, 1], strides = [1, 1]} : vector<16x3xf32> to vector<16x1xf32>
    %53 = vector.broadcast %52 : vector<16x1xf32> to vector<16x128xf32>
    %54 = arith.mulf %1, %53 : vector<16x128xf32>
    %55 = arith.addf %51, %54 : vector<16x128xf32>
    %56 = vector.extract_strided_slice %31 {offsets = [0, 2], sizes = [16, 1], strides = [1, 1]} : vector<16x3xf32> to vector<16x1xf32>
    %57 = vector.broadcast %56 : vector<16x1xf32> to vector<16x128xf32>
    %58 = arith.mulf %2, %57 : vector<16x128xf32>
    %59 = arith.addf %55, %58 : vector<16x128xf32>
    %c0_32 = arith.constant 0 : index
    %c0_33 = arith.constant 0 : index
    %60 = vector.load %arg10[%c0_32, %c0_33] : memref<16x128xf32, #tpu.memory_space<vmem>>, vector<16x128xf32>
    tpu.vector_store %arg10[%c0_32, %c0_33], %59 {strides = array<i32>} : memref<16x128xf32, #tpu.memory_space<vmem>>, vector<16x128xf32>,
    return
  }
  func.func @transform_0(%arg0: i32) -> (i32, i32) {
    %c0_i32 = arith.constant 0 : i32
    %c0_i32_0 = arith.constant 0 : i32
    return %arg0, %c0_i32 : i32, i32
  }
  func.func @transform_1(%arg0: i32) -> (i32, i32) {
    %c0_i32 = arith.constant 0 : i32
    %c0_i32_0 = arith.constant 0 : i32
    return %arg0, %c0_i32 : i32, i32
  }
  func.func @transform_2(%arg0: i32) -> (i32, i32) {
    %c0_i32 = arith.constant 0 : i32
    %c0_i32_0 = arith.constant 0 : i32
    return %arg0, %c0_i32 : i32, i32
  }
  func.func @transform_3(%arg0: i32) -> (i32, i32) {
    %c0_i32 = arith.constant 0 : i32
    %c0_i32_0 = arith.constant 0 : i32
    %c0_i32_1 = arith.constant 0 : i32
    return %c0_i32, %c0_i32_0 : i32, i32
  }
  func.func @transform_4(%arg0: i32) -> (i32, i32) {
    %c0_i32 = arith.constant 0 : i32
    %c0_i32_0 = arith.constant 0 : i32
    %c0_i32_1 = arith.constant 0 : i32
    return %c0_i32, %c0_i32_0 : i32, i32
  }
  func.func @transform_5(%arg0: i32) -> (i32, i32) {
    %c0_i32 = arith.constant 0 : i32
    %c0_i32_0 = arith.constant 0 : i32
    %c0_i32_1 = arith.constant 0 : i32
    return %c0_i32, %c0_i32_0 : i32, i32
  }
  func.func @transform_6(%arg0: i32) -> (i32, i32) {
    %c0_i32 = arith.constant 0 : i32
    %c0_i32_0 = arith.constant 0 : i32
    %c0_i32_1 = arith.constant 0 : i32
    return %c0_i32, %c0_i32_0 : i32, i32
  }
  func.func @transform_7(%arg0: i32) -> (i32, i32) {
    %c0_i32 = arith.constant 0 : i32
    %c0_i32_0 = arith.constant 0 : i32
    %c0_i32_1 = arith.constant 0 : i32
    return %c0_i32, %c0_i32_0 : i32, i32
  }
  func.func @transform_8(%arg0: i32) -> (i32, i32) {
    %c0_i32 = arith.constant 0 : i32
    %c0_i32_0 = arith.constant 0 : i32
    return %c0_i32, %arg0 : i32, i32
  }
  func.func @transform_9(%arg0: i32) -> (i32, i32) {
    %c0_i32 = arith.constant 0 : i32
    %c0_i32_0 = arith.constant 0 : i32
    return %arg0, %c0_i32 : i32, i32
  }
}

</mosaic_0001>

<llo_original>
// kernel: tpu_custom_call.1
$region0: #{tpu_custom_call.1}
  #allocation0 [shape = 'u32[]', space=smem, size = 0x4, offset = 0x4, fixed_abs, tag = 'smem constant byte address 0x4 - core index']
  #allocation1 [shape = 'u32[144,128]{1,0:T(1,128)}', space=vmem, size = 0x12000, scoped, tag = 'internal scratch']
  %s0 = inlined_call_operand.vmem [shape: f32[16,128], index: 0, kind: input, shape index: {}]
  %s1 = inlined_call_operand.vmem [shape: f32[16,128], index: 1, kind: input, shape index: {}]
  %s2 = inlined_call_operand.vmem [shape: f32[16,128], index: 2, kind: input, shape index: {}]
  %s3 = inlined_call_operand.vmem [shape: f32[384,64], index: 3, kind: input, shape index: {}]
  %s4 = inlined_call_operand.vmem [shape: f32[1,64], index: 4, kind: input, shape index: {}]
  %s5 = inlined_call_operand.vmem [shape: f32[3,64], index: 5, kind: input, shape index: {}]
  %s6 = inlined_call_operand.vmem [shape: f32[1,3], index: 6, kind: input, shape index: {}]
  %s7 = inlined_call_operand.vmem [shape: f32[3,1], index: 7, kind: input, shape index: {}]
  %s8 = inlined_call_operand.hbm [shape: f32[3,16], index: 8, kind: output, shape index: {0}]
  %s9 = inlined_call_operand.hbm [shape: f32[16,128], index: 9, kind: output, shape index: {1}]
  %10 = xla_tuple %s8, %s9
  %s11 = sld [smem:[#allocation0]]
  $region50: #{tpu_custom_call.1} parent=0
    _
  %s13 = ssub.s32 1, %s11
  %s14 = scalar_select 0, %s13, %s11
  $region1: #{tpu_custom_call.1} parent=0
    #allocation2 [shape = 'u8[2048]{0}', space=vmem, size = 0x800, scoped, tag = 'output window, operand 0, single buffered']
    #allocation3 [shape = 's32[1]{0}', space=sflag, size = 0x4, scoped, tag = 'scoped memory for tpu_custom_call.1']
    #allocation4 [shape = 'u8[8192]{0}', space=vmem, size = 0x2000, scoped, tag = 'output window, operand 1, single buffered']
    #allocation5 [shape = 's32[1]{0}', space=sflag, size = 0x4, scoped, tag = 'scoped memory for tpu_custom_call.1']
    %15 = vsyncpa [#allocation3], 0
    %16 = vsyncpa [#allocation5], 0
    // Predicated region
    $region2: #{tpu_custom_call.1} parent=1 // pred_check
      _
    $region3: #{tpu_custom_call.1} parent=1 // pred_check_branch
      %18 = sbr.rel (0) target = $region5
    $region4: #{tpu_custom_call.1} parent=1 // pred_region
      _
    $region5: #{tpu_custom_call.1} parent=1 // pred_fallthru
      _
    // Predicated region
    $region6: #{tpu_custom_call.1} parent=1 // pred_check
      _
    $region7: #{tpu_custom_call.1} parent=1 // pred_check_branch
      %20 = sbr.rel (0) target = $region9
    $region8: #{tpu_custom_call.1} parent=1 // pred_region
      _
    $region9: #{tpu_custom_call.1} parent=1 // pred_fallthru
      _
    // Predicated region
    $region10: #{tpu_custom_call.1} parent=1 // pred_check
      _
    $region11: #{tpu_custom_call.1} parent=1 // pred_check_branch
      %22 = sbr.rel (0) target = $region13
    $region12: #{tpu_custom_call.1} parent=1 // pred_region
      _
    $region13: #{tpu_custom_call.1} parent=1 // pred_fallthru
      _
    // Predicated region
    $region14: #{tpu_custom_call.1} parent=1 // pred_check
      _
    $region15: #{tpu_custom_call.1} parent=1 // pred_check_branch
      %24 = sbr.rel (0) target = $region17
    $region16: #{tpu_custom_call.1} parent=1 // pred_region
      _
    $region17: #{tpu_custom_call.1} parent=1 // pred_fallthru
      _
    // Predicated region
    $region18: #{tpu_custom_call.1} parent=1 // pred_check
      _
    $region19: #{tpu_custom_call.1} parent=1 // pred_check_branch
      %26 = sbr.rel (0) target = $region21
    $region20: #{tpu_custom_call.1} parent=1 // pred_region
      _
    $region21: #{tpu_custom_call.1} parent=1 // pred_fallthru
      _
    // Predicated region
    $region22: #{tpu_custom_call.1} parent=1 // pred_check
      _
    $region23: #{tpu_custom_call.1} parent=1 // pred_check_branch
      %28 = sbr.rel (0) target = $region25
    $region24: #{tpu_custom_call.1} parent=1 // pred_region
      _
    $region25: #{tpu_custom_call.1} parent=1 // pred_fallthru
      _
    // Predicated region
    $region26: #{tpu_custom_call.1} parent=1 // pred_check
      _
    $region27: #{tpu_custom_call.1} parent=1 // pred_check_branch
      %30 = sbr.rel (0) target = $region29
    $region28: #{tpu_custom_call.1} parent=1 // pred_region
      _
    $region29: #{tpu_custom_call.1} parent=1 // pred_fallthru
      _
    // Predicated region
    $region30: #{tpu_custom_call.1} parent=1 // pred_check
      _
    $region31: #{tpu_custom_call.1} parent=1 // pred_check_branch
      %32 = sbr.rel (0) target = $region33
    $region32: #{tpu_custom_call.1} parent=1 // pred_region
      _
    $region33: #{tpu_custom_call.1} parent=1 // pred_fallthru
      _
    %v33 = vld [vmem:[%s0] sm:$0xff]
    %v34 = vld [vmem:[%s0 + $0x8] sm:$0xff]
    %v35 = vld [vmem:[%s1] sm:$0xff]
    %v36 = vld [vmem:[%s1 + $0x8] sm:$0xff]
    %v37 = vld [vmem:[%s2] sm:$0xff]
    %v38 = vld [vmem:[%s2 + $0x8] sm:$0xff]
    %v39 = vld [vmem:[%s3] sm:$0xff]
    %v40 = vld [vmem:[%s3 + $0x8] sm:$0xff]
    %v41 = vld [vmem:[%s3 + $0x10] sm:$0xff]
    %v42 = vld [vmem:[%s3 + $0x18] sm:$0xff]
    %v43 = vld [vmem:[%s3 + $0x20] sm:$0xff]
    %v44 = vld [vmem:[%s3 + $0x28] sm:$0xff]
    %v45 = vld [vmem:[%s3 + $0x30] sm:$0xff]
    %v46 = vld [vmem:[%s3 + $0x38] sm:$0xff]
    %v47 = vld [vmem:[%s3 + $0x40] sm:$0xff]
    %v48 = vld [vmem:[%s3 + $0x48] sm:$0xff]
    %v49 = vld [vmem:[%s3 + $0x50] sm:$0xff]
    %v50 = vld [vmem:[%s3 + $0x58] sm:$0xff]
    %v51 = vld [vmem:[%s3 + $0x60] sm:$0xff]
    %v52 = vld [vmem:[%s3 + $0x68] sm:$0xff]
    %v53 = vld [vmem:[%s3 + $0x70] sm:$0xff]
    %v54 = vld [vmem:[%s3 + $0x78] sm:$0xff]
    %v55 = vld [vmem:[%s3 + $0x80] sm:$0xff]
    %v56 = vld [vmem:[%s3 + $0x88] sm:$0xff]
    %v57 = vld [vmem:[%s3 + $0x90] sm:$0xff]
    %v58 = vld [vmem:[%s3 + $0x98] sm:$0xff]
    %v59 = vld [vmem:[%s3 + $0xa0] sm:$0xff]
    %v60 = vld [vmem:[%s3 + $0xa8] sm:$0xff]
    %v61 = vld [vmem:[%s3 + $0xb0] sm:$0xff]
    %v62 = vld [vmem:[%s3 + $0xb8] sm:$0xff]
    %v63 = vld [vmem:[%s3 + $0xc0] sm:$0xff]
    %v64 = vld [vmem:[%s3 + $0xc8] sm:$0xff]
    %v65 = vld [vmem:[%s3 + $0xd0] sm:$0xff]
    %v66 = vld [vmem:[%s3 + $0xd8] sm:$0xff]
    %v67 = vld [vmem:[%s3 + $0xe0] sm:$0xff]
    %v68 = vld [vmem:[%s3 + $0xe8] sm:$0xff]
    %v69 = vld [vmem:[%s3 + $0xf0] sm:$0xff]
    %v70 = vld [vmem:[%s3 + $0xf8] sm:$0xff]
    %71 = vmatprep.subr.mxu0 0.0
    %72 = vmatpush1.msra.mxu0 %v55
    %73 = vmatprep.subr.mxu0 0.0
    %74 = vmatpush1.msra.mxu0 %v56
    %75 = vmatprep.subr.mxu0 0.0
    %76 = vmatpush1.msra.mxu0 %v57
    %77 = vmatprep.subr.mxu0 0.0
    %78 = vmatpush1.msra.mxu0 %v58
    %79 = vmatprep.subr.mxu0 0.0
    %80 = vmatpush1.msra.mxu0 %v59
    %81 = vmatprep.subr.mxu0 0.0
    %82 = vmatpush1.msra.mxu0 %v60
    %83 = vmatprep.subr.mxu0 0.0
    %84 = vmatpush1.msra.mxu0 %v61
    %85 = vmatprep.subr.mxu0 0.0
    %86 = vmatpush1.msra.mxu0 %v62
    %87 = vmatprep.subr.mxu0 0.0
    %88 = vmatpush1.msra.mxu0 %v63
    %89 = vmatprep.subr.mxu0 0.0
    %90 = vmatpush1.msra.mxu0 %v64
    %91 = vmatprep.subr.mxu0 0.0
    %92 = vmatpush1.msra.mxu0 %v65
    %93 = vmatprep.subr.mxu0 0.0
    %94 = vmatpush1.msra.mxu0 %v66
    %95 = vmatprep.subr.mxu0 0.0
    %96 = vmatpush1.msra.mxu0 %v67
    %97 = vmatprep.subr.mxu0 0.0
    %98 = vmatpush1.msra.mxu0 %v68
    %99 = vmatprep.subr.mxu0 0.0
    %100 = vmatpush1.msra.mxu0 %v69
    %101 = vmatprep.subr.mxu0 0.0
    %102 = vmatpush1.msra.mxu0 %v70
    %103 = vmatprep.subr.mxu0 0.0
    %104 = vmatpush1.msra.mxu0 0.0
    %105 = vmatprep.subr.mxu0 0.0
    %106 = vmatpush1.msra.mxu0 0.0
    %107 = vmatprep.subr.mxu0 0.0
    %108 = vmatpush1.msra.mxu0 0.0
    %109 = vmatprep.subr.mxu0 0.0
    %110 = vmatpush1.msra.mxu0 0.0
    %111 = vmatprep.subr.mxu0 0.0
    %112 = vmatpush1.msra.mxu0 0.0
    %113 = vmatprep.subr.mxu0 0.0
    %114 = vmatpush1.msra.mxu0 0.0
    %115 = vmatprep.subr.mxu0 0.0
    %116 = vmatpush1.msra.mxu0 0.0
    %117 = vmatprep.subr.mxu0 0.0
    %118 = vmatpush1.msra.mxu0 0.0
    %119 = vmatprep.subr.mxu0 0.0
    %120 = vmatpush1.msra.mxu0 0.0
    %121 = vmatprep.subr.mxu0 0.0
    %122 = vmatpush1.msra.mxu0 0.0
    %123 = vmatprep.subr.mxu0 0.0
    %124 = vmatpush1.msra.mxu0 0.0
    %125 = vmatprep.subr.mxu0 0.0
    %126 = vmatpush1.msra.mxu0 0.0
    %127 = vmatprep.subr.mxu0 0.0
    %128 = vmatpush1.msra.mxu0 0.0
    %129 = vmatprep.subr.mxu0 0.0
    %130 = vmatpush1.msra.mxu0 0.0
    %131 = vmatprep.subr.mxu0 0.0
    %132 = vmatpush1.msra.mxu0 0.0
    %133 = vmatprep.subr.mxu0 0.0
    %134 = vmatpush1.msra.mxu0 0.0
    %135 = vmatprep.mubr.f32.mxu0 0.0
    %136 = vmatmul.mubr.f32.gmra.mrb[0].mxu0 %v35
    %v137 = vpop.f32.mrb[0].mxu0
    %v138 = vadd.f32 0.0, %v137
    %v139 = vpop.f32.mrb[0].mxu0
    %140 = vmatprep.mubr.f32.mxu0 0.0
    %141 = vmatmul.mubr.f32.gmra.mrb[0].mxu0 %v36
    %v142 = vpop.f32.mrb[0].mxu0
    %v143 = vadd.f32 0.0, %v142
    %v144 = vpop.f32.mrb[0].mxu0
    %145 = vdwg.mxu0
    %146 = vmatprep.subr.mxu0 0.0
    %147 = vmatpush1.msra.mxu0 %v39
    %148 = vmatprep.subr.mxu0 0.0
    %149 = vmatpush1.msra.mxu0 %v40
    %150 = vmatprep.subr.mxu0 0.0
    %151 = vmatpush1.msra.mxu0 %v41
    %152 = vmatprep.subr.mxu0 0.0
    %153 = vmatpush1.msra.mxu0 %v42
    %154 = vmatprep.subr.mxu0 0.0
    %155 = vmatpush1.msra.mxu0 %v43
    %156 = vmatprep.subr.mxu0 0.0
    %157 = vmatpush1.msra.mxu0 %v44
    %158 = vmatprep.subr.mxu0 0.0
    %159 = vmatpush1.msra.mxu0 %v45
    %160 = vmatprep.subr.mxu0 0.0
    %161 = vmatpush1.msra.mxu0 %v46
    %162 = vmatprep.subr.mxu0 0.0
    %163 = vmatpush1.msra.mxu0 %v47
    %164 = vmatprep.subr.mxu0 0.0
    %165 = vmatpush1.msra.mxu0 %v48
    %166 = vmatprep.subr.mxu0 0.0
    %167 = vmatpush1.msra.mxu0 %v49
    %168 = vmatprep.subr.mxu0 0.0
    %169 = vmatpush1.msra.mxu0 %v50
    %170 = vmatprep.subr.mxu0 0.0
    %171 = vmatpush1.msra.mxu0 %v51
    %172 = vmatprep.subr.mxu0 0.0
    %173 = vmatpush1.msra.mxu0 %v52
    %174 = vmatprep.subr.mxu0 0.0
    %175 = vmatpush1.msra.mxu0 %v53
    %176 = vmatprep.subr.mxu0 0.0
    %177 = vmatpush1.msra.mxu0 %v54
    %178 = vmatprep.subr.mxu0 0.0
    %179 = vmatpush1.msra.mxu0 0.0
    %180 = vmatprep.subr.mxu0 0.0
    %181 = vmatpush1.msra.mxu0 0.0
    %182 = vmatprep.subr.mxu0 0.0
    %183 = vmatpush1.msra.mxu0 0.0
    %184 = vmatprep.subr.mxu0 0.0
    %185 = vmatpush1.msra.mxu0 0.0
    %186 = vmatprep.subr.mxu0 0.0
    %187 = vmatpush1.msra.mxu0 0.0
    %188 = vmatprep.subr.mxu0 0.0
    %189 = vmatpush1.msra.mxu0 0.0
    %190 = vmatprep.subr.mxu0 0.0
    %191 = vmatpush1.msra.mxu0 0.0
    %192 = vmatprep.subr.mxu0 0.0
    %193 = vmatpush1.msra.mxu0 0.0
    %194 = vmatprep.subr.mxu0 0.0
    %195 = vmatpush1.msra.mxu0 0.0
    %196 = vmatprep.subr.mxu0 0.0
    %197 = vmatpush1.msra.mxu0 0.0
    %198 = vmatprep.subr.mxu0 0.0
    %199 = vmatpush1.msra.mxu0 0.0
    %200 = vmatprep.subr.mxu0 0.0
    %201 = vmatpush1.msra.mxu0 0.0
    %202 = vmatprep.subr.mxu0 0.0
    %203 = vmatpush1.msra.mxu0 0.0
    %204 = vmatprep.subr.mxu0 0.0
    %205 = vmatpush1.msra.mxu0 0.0
    %206 = vmatprep.subr.mxu0 0.0
    %207 = vmatpush1.msra.mxu0 0.0
    %208 = vmatprep.subr.mxu0 0.0
    %209 = vmatpush1.msra.mxu0 0.0
    %210 = vmatprep.mubr.f32.mxu0 0.0
    %211 = vmatmul.mubr.f32.gmra.mrb[0].mxu0 %v33
    %v212 = vpop.f32.mrb[0].mxu0
    %v213 = vadd.f32 %v138, %v212
    %v214 = vpop.f32.mrb[0].mxu0
    %215 = vmatprep.mubr.f32.mxu0 0.0
    %216 = vmatmul.mubr.f32.gmra.mrb[0].mxu0 %v34
    %v217 = vpop.f32.mrb[0].mxu0
    %v218 = vadd.f32 %v143, %v217
    %v219 = vpop.f32.mrb[0].mxu0
    %220 = vdwg.mxu0
    %v221 = vld [vmem:[%s3 + $0x100] sm:$0xff]
    %v222 = vld [vmem:[%s3 + $0x108] sm:$0xff]
    %v223 = vld [vmem:[%s3 + $0x110] sm:$0xff]
    %v224 = vld [vmem:[%s3 + $0x118] sm:$0xff]
    %v225 = vld [vmem:[%s3 + $0x120] sm:$0xff]
    %v226 = vld [vmem:[%s3 + $0x128] sm:$0xff]
    %v227 = vld [vmem:[%s3 + $0x130] sm:$0xff]
    %v228 = vld [vmem:[%s3 + $0x138] sm:$0xff]
    %v229 = vld [vmem:[%s3 + $0x140] sm:$0xff]
    %v230 = vld [vmem:[%s3 + $0x148] sm:$0xff]
    %v231 = vld [vmem:[%s3 + $0x150] sm:$0xff]
    %v232 = vld [vmem:[%s3 + $0x158] sm:$0xff]
    %v233 = vld [vmem:[%s3 + $0x160] sm:$0xff]
    %v234 = vld [vmem:[%s3 + $0x168] sm:$0xff]
    %v235 = vld [vmem:[%s3 + $0x170] sm:$0xff]
    %v236 = vld [vmem:[%s3 + $0x178] sm:$0xff]
    %237 = vmatprep.subr.mxu0 0.0
    %238 = vmatpush1.msra.mxu0 %v221
    %239 = vmatprep.subr.mxu0 0.0
    %240 = vmatpush1.msra.mxu0 %v222
    %241 = vmatprep.subr.mxu0 0.0
    %242 = vmatpush1.msra.mxu0 %v223
    %243 = vmatprep.subr.mxu0 0.0
    %244 = vmatpush1.msra.mxu0 %v224
    %245 = vmatprep.subr.mxu0 0.0
    %246 = vmatpush1.msra.mxu0 %v225
    %247 = vmatprep.subr.mxu0 0.0
    %248 = vmatpush1.msra.mxu0 %v226
    %249 = vmatprep.subr.mxu0 0.0
    %250 = vmatpush1.msra.mxu0 %v227
    %251 = vmatprep.subr.mxu0 0.0
    %252 = vmatpush1.msra.mxu0 %v228
    %253 = vmatprep.subr.mxu0 0.0
    %254 = vmatpush1.msra.mxu0 %v229
    %255 = vmatprep.subr.mxu0 0.0
    %256 = vmatpush1.msra.mxu0 %v230
    %257 = vmatprep.subr.mxu0 0.0
    %258 = vmatpush1.msra.mxu0 %v231
    %259 = vmatprep.subr.mxu0 0.0
    %260 = vmatpush1.msra.mxu0 %v232
    %261 = vmatprep.subr.mxu0 0.0
    %262 = vmatpush1.msra.mxu0 %v233
    %263 = vmatprep.subr.mxu0 0.0
    %264 = vmatpush1.msra.mxu0 %v234
    %265 = vmatprep.subr.mxu0 0.0
    %266 = vmatpush1.msra.mxu0 %v235
    %267 = vmatprep.subr.mxu0 0.0
    %268 = vmatpush1.msra.mxu0 %v236
    %269 = vmatprep.subr.mxu0 0.0
    %270 = vmatpush1.msra.mxu0 0.0
    %271 = vmatprep.subr.mxu0 0.0
    %272 = vmatpush1.msra.mxu0 0.0
    %273 = vmatprep.subr.mxu0 0.0
    %274 = vmatpush1.msra.mxu0 0.0
    %275 = vmatprep.subr.mxu0 0.0
    %276 = vmatpush1.msra.mxu0 0.0
    %277 = vmatprep.subr.mxu0 0.0
    %278 = vmatpush1.msra.mxu0 0.0
    %279 = vmatprep.subr.mxu0 0.0
    %280 = vmatpush1.msra.mxu0 0.0
    %281 = vmatprep.subr.mxu0 0.0
    %282 = vmatpush1.msra.mxu0 0.0
    %283 = vmatprep.subr.mxu0 0.0
    %284 = vmatpush1.msra.mxu0 0.0
    %285 = vmatprep.subr.mxu0 0.0
    %286 = vmatpush1.msra.mxu0 0.0
    %287 = vmatprep.subr.mxu0 0.0
    %288 = vmatpush1.msra.mxu0 0.0
    %289 = vmatprep.subr.mxu0 0.0
    %290 = vmatpush1.msra.mxu0 0.0
    %291 = vmatprep.subr.mxu0 0.0
    %292 = vmatpush1.msra.mxu0 0.0
    %293 = vmatprep.subr.mxu0 0.0
    %294 = vmatpush1.msra.mxu0 0.0
    %295 = vmatprep.subr.mxu0 0.0
    %296 = vmatpush1.msra.mxu0 0.0
    %297 = vmatprep.subr.mxu0 0.0
    %298 = vmatpush1.msra.mxu0 0.0
    %299 = vmatprep.subr.mxu0 0.0
    %300 = vmatpush1.msra.mxu0 0.0
    %301 = vmatprep.mubr.f32.mxu0 0.0
    %302 = vmatmul.mubr.f32.gmra.mrb[0].mxu0 %v37
    %v303 = vpop.f32.mrb[0].mxu0
    %v304 = vadd.f32 0.0, %v303
    %v305 = vpop.f32.mrb[0].mxu0
    %306 = vmatprep.mubr.f32.mxu0 0.0
    %307 = vmatmul.mubr.f32.gmra.mrb[0].mxu0 %v38
    %v308 = vpop.f32.mrb[0].mxu0
    %v309 = vadd.f32 0.0, %v308
    %v310 = vpop.f32.mrb[0].mxu0
    %311 = vdwg.mxu0
    %v312 = vadd.f32 %v213, %v304
    %v313 = vadd.f32 %v218, %v309
    %v314 = vld [vmem:[%s4] sm:$0x1]
    %v316 = vlaneseq
    %v317 = vshrl.u32 %v316, 7
    %v318 = vsub.s32 0, %v317
    %v319 = vrot.slane %v314, %v318
    %v321 = vadd.f32 %v312, %v319
    %v322 = vadd.f32 %v313, %v319
    %v323 = vmax.f32 %v321, 0.0
    %v324 = vmax.f32 %v322, 0.0
    %v325 = vld [vmem:[%s5] sm:$0x7]
    %v326 = vld [vmem:[%s6] sm:$0x1]
    %v328 = vlaneseq
    %v329 = vshrl.u32 %v328, 7
    %v330 = vsub.s32 0, %v329
    %v331 = vrot.slane %v326, %v330
    %vm333 = vcmask 523264
    %v335 = vsel %vm333, %v323, 0
    %v338 = vsel %vm333, %v324, 0
    %v341 = vsel %vm333, %v325, 0
    %343 = vmatprep.subr.mxu0 0.0
    %344 = vmatpush1.xpose.msra.mxu0 %v341
    %345 = vmatprep.subr.mxu0 0.0
    %346 = vmatpush1.xpose.msra.mxu0 0.0
    %347 = vmatprep.subr.mxu0 0.0
    %348 = vmatpush1.xpose.msra.mxu0 0.0
    %349 = vmatprep.subr.mxu0 0.0
    %350 = vmatpush1.xpose.msra.mxu0 0.0
    %351 = vmatprep.subr.mxu0 0.0
    %352 = vmatpush1.xpose.msra.mxu0 0.0
    %353 = vmatprep.subr.mxu0 0.0
    %354 = vmatpush1.xpose.msra.mxu0 0.0
    %355 = vmatprep.subr.mxu0 0.0
    %356 = vmatpush1.xpose.msra.mxu0 0.0
    %357 = vmatprep.subr.mxu0 0.0
    %358 = vmatpush1.xpose.msra.mxu0 0.0
    %359 = vmatprep.subr.mxu0 0.0
    %360 = vmatpush1.xpose.msra.mxu0 0.0
    %361 = vmatprep.subr.mxu0 0.0
    %362 = vmatpush1.xpose.msra.mxu0 0.0
    %363 = vmatprep.subr.mxu0 0.0
    %364 = vmatpush1.xpose.msra.mxu0 0.0
    %365 = vmatprep.subr.mxu0 0.0
    %366 = vmatpush1.xpose.msra.mxu0 0.0
    %367 = vmatprep.subr.mxu0 0.0
    %368 = vmatpush1.xpose.msra.mxu0 0.0
    %369 = vmatprep.subr.mxu0 0.0
    %370 = vmatpush1.xpose.msra.mxu0 0.0
    %371 = vmatprep.subr.mxu0 0.0
    %372 = vmatpush1.xpose.msra.mxu0 0.0
    %373 = vmatprep.subr.mxu0 0.0
    %374 = vmatpush1.xpose.msra.mxu0 0.0
    %375 = vmatprep.subr.mxu0 0.0
    %376 = vmatpush1.xpose.msra.mxu0 0.0
    %377 = vmatprep.subr.mxu0 0.0
    %378 = vmatpush1.xpose.msra.mxu0 0.0
    %379 = vmatprep.subr.mxu0 0.0
    %380 = vmatpush1.xpose.msra.mxu0 0.0
    %381 = vmatprep.subr.mxu0 0.0
    %382 = vmatpush1.xpose.msra.mxu0 0.0
    %383 = vmatprep.subr.mxu0 0.0
    %384 = vmatpush1.xpose.msra.mxu0 0.0
    %385 = vmatprep.subr.mxu0 0.0
    %386 = vmatpush1.xpose.msra.mxu0 0.0
    %387 = vmatprep.subr.mxu0 0.0
    %388 = vmatpush1.xpose.msra.mxu0 0.0
    %389 = vmatprep.subr.mxu0 0.0
    %390 = vmatpush1.xpose.msra.mxu0 0.0
    %391 = vmatprep.subr.mxu0 0.0
    %392 = vmatpush1.xpose.msra.mxu0 0.0
    %393 = vmatprep.subr.mxu0 0.0
    %394 = vmatpush1.xpose.msra.mxu0 0.0
    %395 = vmatprep.subr.mxu0 0.0
    %396 = vmatpush1.xpose.msra.mxu0 0.0
    %397 = vmatprep.subr.mxu0 0.0
    %398 = vmatpush1.xpose.msra.mxu0 0.0
    %399 = vmatprep.subr.mxu0 0.0
    %400 = vmatpush1.xpose.msra.mxu0 0.0
    %401 = vmatprep.subr.mxu0 0.0
    %402 = vmatpush1.xpose.msra.mxu0 0.0
    %403 = vmatprep.subr.mxu0 0.0
    %404 = vmatpush1.xpose.msra.mxu0 0.0
    %405 = vmatprep.subr.mxu0 0.0
    %406 = vmatpush1.xpose.msra.mxu0 0.0
    %407 = vmatprep.mubr.f32.mxu0 0.0
    %408 = vmatmul.mubr.f32.gmra.mrb[0].mxu0 %v335
    %v409 = vpop.f32.mrb[0].mxu0
    %v410 = vadd.f32 %v331, %v409
    %v411 = vpop.f32.mrb[0].mxu0
    %412 = vmatprep.mubr.f32.mxu0 0.0
    %413 = vmatmul.mubr.f32.gmra.mrb[0].mxu0 %v338
    %v414 = vpop.f32.mrb[0].mxu0
    %v415 = vadd.f32 %v331, %v414
    %v416 = vpop.f32.mrb[0].mxu0
    %417 = vdwg.mxu0
    %v418 = vmul.f32 %v410, 0.088388346
    %v419 = vmul.f32 %v415, 0.088388346
    %vm420 = vcmask 23552
    %v421 = vsel %vm420, %v418, -inf
    %422 = vmax.xlane.f32.xlu0 %v421
    %v423 = vpop.xlane.xlu0 %422
    %v424 = vsel %vm420, %v419, -inf
    %425 = vmax.xlane.f32.xlu0 %v424
    %v426 = vpop.xlane.xlu0 %425
    %v427 = vsub.f32 %v418, %v423
    %v428 = vsub.f32 %v419, %v426
    %v429 = vmul.f32 %v427, 1.442695
    %v430 = vpow.pop %v429
    %v431 = vmul.f32 %v428, 1.442695
    %v432 = vpow.pop %v431
    %v433 = vsel %vm420, %v430, 0.0
    %434 = vadd.xlane.f32.xlu0 %v433
    %v435 = vpop.xlane.xlu0 %434
    %v436 = vsel %vm420, %v432, 0.0
    %437 = vadd.xlane.f32.xlu0 %v436
    %v438 = vpop.xlane.xlu0 %437
    %v439 = vrcp.pop %v435
    %v440 = vmul.f32 %v430, %v439
    %v441 = vrcp.pop %v438
    %v442 = vmul.f32 %v432, %v441
    %v443 = vld [vmem:[%s7] sm:$0x7]
    %445 = vset.pattern.permute.xlu0 0
    %446 = vperm.xlu0 %445, %v443
    %v447 = vpop.permute.xlu0 %446
    %449 = vmatprep.subr.mxu0 0.0
    %450 = vmatpush1.xpose.msra.mxu0 %v335
    %451 = vmatprep.subr.mxu0 0.0
    %452 = vmatpush1.xpose.msra.mxu0 %v338
    %453 = vmatprep.subr.mxu0 0.0
    %454 = vmatpush1.xpose.msra.mxu0 0.0
    %455 = vmatprep.subr.mxu0 0.0
    %456 = vmatpush1.xpose.msra.mxu0 0.0
    %457 = vmatprep.subr.mxu0 0.0
    %458 = vmatpush1.xpose.msra.mxu0 0.0
    %459 = vmatprep.subr.mxu0 0.0
    %460 = vmatpush1.xpose.msra.mxu0 0.0
    %461 = vmatprep.subr.mxu0 0.0
    %462 = vmatpush1.xpose.msra.mxu0 0.0
    %463 = vmatprep.subr.mxu0 0.0
    %464 = vmatpush1.xpose.msra.mxu0 0.0
    %465 = vmatprep.subr.mxu0 0.0
    %466 = vmatpush1.xpose.msra.mxu0 0.0
    %467 = vmatprep.subr.mxu0 0.0
    %468 = vmatpush1.xpose.msra.mxu0 0.0
    %469 = vmatprep.subr.mxu0 0.0
    %470 = vmatpush1.xpose.msra.mxu0 0.0
    %471 = vmatprep.subr.mxu0 0.0
    %472 = vmatpush1.xpose.msra.mxu0 0.0
    %473 = vmatprep.subr.mxu0 0.0
    %474 = vmatpush1.xpose.msra.mxu0 0.0
    %475 = vmatprep.subr.mxu0 0.0
    %476 = vmatpush1.xpose.msra.mxu0 0.0
    %477 = vmatprep.subr.mxu0 0.0
    %478 = vmatpush1.xpose.msra.mxu0 0.0
    %479 = vmatprep.subr.mxu0 0.0
    %480 = vmatpush1.xpose.msra.mxu0 0.0
    %481 = vmatprep.subr.mxu0 0.0
    %482 = vmatpush1.xpose.msra.mxu0 0.0
    %483 = vmatprep.subr.mxu0 0.0
    %484 = vmatpush1.xpose.msra.mxu0 0.0
    %485 = vmatprep.subr.mxu0 0.0
    %486 = vmatpush1.xpose.msra.mxu0 0.0
    %487 = vmatprep.subr.mxu0 0.0
    %488 = vmatpush1.xpose.msra.mxu0 0.0
    %489 = vmatprep.subr.mxu0 0.0
    %490 = vmatpush1.xpose.msra.mxu0 0.0
    %491 = vmatprep.subr.mxu0 0.0
    %492 = vmatpush1.xpose.msra.mxu0 0.0
    %493 = vmatprep.subr.mxu0 0.0
    %494 = vmatpush1.xpose.msra.mxu0 0.0
    %495 = vmatprep.subr.mxu0 0.0
    %496 = vmatpush1.xpose.msra.mxu0 0.0
    %497 = vmatprep.subr.mxu0 0.0
    %498 = vmatpush1.xpose.msra.mxu0 0.0
    %499 = vmatprep.subr.mxu0 0.0
    %500 = vmatpush1.xpose.msra.mxu0 0.0
    %501 = vmatprep.subr.mxu0 0.0
    %502 = vmatpush1.xpose.msra.mxu0 0.0
    %503 = vmatprep.subr.mxu0 0.0
    %504 = vmatpush1.xpose.msra.mxu0 0.0
    %505 = vmatprep.subr.mxu0 0.0
    %506 = vmatpush1.xpose.msra.mxu0 0.0
    %507 = vmatprep.subr.mxu0 0.0
    %508 = vmatpush1.xpose.msra.mxu0 0.0
    %509 = vmatprep.subr.mxu0 0.0
    %510 = vmatpush1.xpose.msra.mxu0 0.0
    %511 = vmatprep.subr.mxu0 0.0
    %512 = vmatpush1.xpose.msra.mxu0 0.0
    %513 = vmatprep.mubr.f32.mxu0 0.0
    %514 = vmatmul.mubr.f32.gmra.mrb[0].mxu0 %v341
    %v515 = vpop.f32.mrb[0].mxu0
    %v516 = vadd.f32 %v447, %v515
    %v517 = vpop.f32.mrb[0].mxu0
    %518 = vdwg.mxu0
    %v519 = vmul.f32 %v516, 0.088388346
    %vm520 = vcmask 124928
    %v521 = vsel %vm520, %v519, -inf
    %v522 = vrot.slane %v521, 4
    %v523 = vmax.f32 %v521, %v522
    %v524 = vrot.slane %v523, 2
    %v525 = vmax.f32 %v523, %v524
    %v526 = vrot.slane %v525, 1
    %v527 = vmax.f32 %v525, %v526
    %v528 = vsub.f32 %v519, %v527
    %v529 = vmul.f32 %v528, 1.442695
    %v530 = vpow.pop %v529
    %v531 = vsel %vm520, %v530, 0.0
    %v532 = vrot.slane %v531, 4
    %v533 = vadd.f32 %v531, %v532
    %v534 = vrot.slane %v533, 2
    %v535 = vadd.f32 %v533, %v534
    %v536 = vrot.slane %v535, 1
    %v537 = vadd.f32 %v535, %v536
    %v538 = vrcp.pop %v537
    %v539 = vmul.f32 %v530, %v538
    %540 = vst.msk [vmem:[#allocation2] sm:$0x7] %vm520, %v539
    %542 = vset.pattern.permute.xlu0 0
    %543 = vperm.xlu0 %542, %v440
    %v544 = vpop.permute.xlu0 %543
    %547 = vset.pattern.permute.xlu0 0
    %548 = vperm.xlu0 %547, %v442
    %v549 = vpop.permute.xlu0 %548
    %v551 = vmul.f32 %v33, %v544
    %v552 = vmul.f32 %v34, %v549
    %553 = vset.pattern.permute.xlu0 1
    %554 = vperm.xlu0 %553, %v440
    %v555 = vpop.permute.xlu0 %554
    %557 = vset.pattern.permute.xlu0 1
    %558 = vperm.xlu0 %557, %v442
    %v559 = vpop.permute.xlu0 %558
    %v561 = vmul.f32 %v35, %v555
    %v562 = vmul.f32 %v36, %v559
    %v563 = vadd.f32 %v551, %v561
    %v564 = vadd.f32 %v552, %v562
    %565 = vset.pattern.permute.xlu0 2
    %566 = vperm.xlu0 %565, %v440
    %v567 = vpop.permute.xlu0 %566
    %569 = vset.pattern.permute.xlu0 2
    %570 = vperm.xlu0 %569, %v442
    %v571 = vpop.permute.xlu0 %570
    %v573 = vmul.f32 %v37, %v567
    %v574 = vmul.f32 %v38, %v571
    %v575 = vadd.f32 %v563, %v573
    %v576 = vadd.f32 %v564, %v574
    %577 = vst [vmem:[#allocation4] sm:$0xff] %v575
    %578 = vst [vmem:[#allocation4 + $0x8] sm:$0xff] %v576
    // Predicated region
    $region34: #{tpu_custom_call.1} parent=1 // pred_check
      _
    $region35: #{tpu_custom_call.1} parent=1 // pred_check_branch
      %580 = sbr.rel (0) target = $region37
    $region36: #{tpu_custom_call.1} parent=1 // pred_region
      %s582 = ssub.s32 64, 64
      %583 = vsyncadd [#allocation3], %s582
      %s585 = sshll.u32 [#allocation2], 4
      %s586 = int_to_ptr.vmem [resolvable:$true] %s585
      %588 = dma.vmem_to_hbm [thread:$0]  %s586, 64, %s8, [#allocation3]
    $region37: #{tpu_custom_call.1} parent=1 // pred_fallthru
      _
    // Predicated region
    $region38: #{tpu_custom_call.1} parent=1 // pred_check
      _
    $region39: #{tpu_custom_call.1} parent=1 // pred_check_branch
      %590 = sbr.rel (0) target = $region41
    $region40: #{tpu_custom_call.1} parent=1 // pred_region
      %s592 = ssub.s32 256, 256
      %593 = vsyncadd [#allocation5], %s592
      %s594 = sshll.u32 [#allocation4], 4
      %s595 = int_to_ptr.vmem [resolvable:$true] %s594
      %600 = dma.vmem_to_hbm [thread:$0]  %s595, 256, %s9, [#allocation5], 128, 128, 8
    $region41: #{tpu_custom_call.1} parent=1 // pred_fallthru
      _
    // Predicated region
    $region42: #{tpu_custom_call.1} parent=1 // pred_check
      _
    $region43: #{tpu_custom_call.1} parent=1 // pred_check_branch
      %602 = sbr.rel (0) target = $region45
    $region44: #{tpu_custom_call.1} parent=1 // pred_region
      %603 = dma.done [#allocation3], 64
    $region45: #{tpu_custom_call.1} parent=1 // pred_fallthru
      _
    // Predicated region
    $region46: #{tpu_custom_call.1} parent=1 // pred_check
      _
    $region47: #{tpu_custom_call.1} parent=1 // pred_check_branch
      %605 = sbr.rel (0) target = $region49
    $region48: #{tpu_custom_call.1} parent=1 // pred_region
      %606 = dma.done [#allocation5], 256
    $region49: #{tpu_custom_call.1} parent=1 // pred_fallthru
      _
    %607 = vsyncpa [#allocation3], 1
    %608 = vsyncpa [#allocation5], 1

</llo_original>
